<compile_context>
chip_gen: v7x
topology: tpu7x:2x2x1
jax: 0.10.0
libtpu: 0.0.40
codegen_flags: <defaults>
</compile_context>

<pallas_src>
import jax
import jax.numpy as jnp
from jax.experimental import pallas as pl
from jax.experimental.pallas import tpu as pltpu


def _scaling_kernel(inv_ref, off_ref, x_ref, o_ref):
    # inv_ref / off_ref: (C,) f32 constants in SMEM (scalar reads + splat).
    # x_ref / o_ref: (1, C, TILE_H, W) VMEM tiles; (TILE_H, W) is a dense slab.
    C = x_ref.shape[1]
    for c in range(C):  # C == 3, static -> unrolled; one dense 2-D slab per channel.
        xc = x_ref[0, c, :, :].astype(jnp.float32)
        o_ref[0, c, :, :] = (xc * inv_ref[c] + off_ref[c]).astype(o_ref.dtype)


def _pick_tile_h(H, W, C, itemsize, *, min_splits=1, target_bytes=2 * 1024 * 1024):
    """Pick TILE_H such that:
       - TILE_H divides H,
       - TILE_H is a multiple of the sublane packing (or equals H, the legal escape hatch),
       - the (1, C, TILE_H, W) block stays around/below ~target_bytes,
       - H // TILE_H >= min_splits when achievable (pipelining / megacore)."""
    sublane = {4: 8, 2: 16, 1: 32}.get(itemsize, 8)
    per_row_bytes = max(1, C * W * itemsize)
    cap = max(sublane, target_bytes // per_row_bytes)
    cap = min(cap, H)
    if min_splits > 1:
        cap = min(cap, max(sublane, H // min_splits))
    for cand in range(cap, 0, -1):
        if H % cand == 0 and (cand % sublane == 0 or cand == H):
            return cand
    # No sublane-aligned divisor found (e.g. small odd H): take the full extent.
    return H


def scaling_layer(x, shift, scale):
    """x: (N, C, H, W); shift/scale: per-channel params broadcastable as (1, C, 1, 1)."""
    N, C, H, W = x.shape
    itemsize = jnp.dtype(x.dtype).itemsize

    # Precompute mul/add constants in f32 (kept f32 even for bf16 inputs).
    inv_scale = (1.0 / scale).reshape(C).astype(jnp.float32)
    offset = (-shift / scale).reshape(C).astype(jnp.float32)

    # >= 2 total grid steps when the batch alone doesn't provide them.
    min_splits = 2 if N < 2 else 1
    tile_h = _pick_tile_h(H, W, C, itemsize, min_splits=min_splits)
    grid = (N, pl.cdiv(H, tile_h))

    out = pl.pallas_call(
        _scaling_kernel,
        out_shape=jax.ShapeDtypeStruct((N, C, H, W), x.dtype),
        grid_spec=pltpu.PrefetchScalarGridSpec(
            num_scalar_prefetch=0,
            grid=grid,
            in_specs=[
                pl.BlockSpec(memory_space=pltpu.MemorySpace.SMEM),  # inv_scale (C,)
                pl.BlockSpec(memory_space=pltpu.MemorySpace.SMEM),  # offset    (C,)
                pl.BlockSpec((1, C, tile_h, W), lambda n, h: (n, 0, h, 0)),
            ],
            out_specs=pl.BlockSpec((1, C, tile_h, W), lambda n, h: (n, 0, h, 0)),
        ),
        compiler_params=pltpu.CompilerParams(
            dimension_semantics=("parallel", "parallel"),
            vmem_limit_bytes=32 * 1024 * 1024,  # safe on v5e/v6e and v7x (64 MiB physical)
        ),
        cost_estimate=pl.CostEstimate(
            flops=2 * N * C * H * W,
            transcendentals=0,
            bytes_accessed=2 * N * C * H * W * itemsize,
        ),
    )(inv_scale, offset, x)

    return out


if __name__ == "__main__":
    # Deterministic parameters exactly as in ScalingLayer.__init__ (C = 3 by spec).
    shift = jnp.asarray([-0.03, -0.088, -0.188], dtype=jnp.float32)[None, :, None, None]
    scale = jnp.asarray([0.458, 0.448, 0.45], dtype=jnp.float32)[None, :, None, None]

    # Small NCHW 3-channel input consistent with the module.
    key = jax.random.PRNGKey(0)
    x = jax.random.normal(key, (2, 3, 16, 16), dtype=jnp.float32)

    out = scaling_layer(x, shift, scale)
    out = jax.block_until_ready(out)

    # Cross-check against plain JAX reference of the PyTorch semantics.
    ref = (x - shift) / scale
    assert out.shape == x.shape and out.dtype == x.dtype
    assert jnp.allclose(out, ref, atol=1e-5, rtol=1e-5)

    print("KERNEL_OK")
</pallas_src>

<mosaic_0001>
module attributes {stable_mosaic.version = 11 : i64} {
  func.func @_scaling_kernel(%arg0: i32, %arg1: i32, %arg2: memref<3xf32, #tpu.memory_space<smem>>, %arg3: memref<3xf32, #tpu.memory_space<smem>>, %arg4: memref<1x3x16x16xf32, #tpu.memory_space<vmem>>, %arg5: memref<1x3x16x16xf32, #tpu.memory_space<vmem>>) attributes {dimension_semantics = [#tpu.dimension_semantics<parallel>, #tpu.dimension_semantics<parallel>], iteration_bounds = array<i64: 2, 1>, scalar_prefetch = 0 : i64, scratch_operands = 0 : i64, tpu.core_type = #tpu.core_type<tc>, window_params = [{transform_indices = @transform_0, window_bounds = array<i64: 3>}, {transform_indices = @transform_1, window_bounds = array<i64: 3>}, {transform_indices = @transform_2, window_bounds = array<i64: 1, 3, 16, 16>}, {transform_indices = @transform_3, window_bounds = array<i64: 1, 3, 16, 16>}]} {
    %c0 = arith.constant 0 : index
    %c0_0 = arith.constant 0 : index
    %c0_1 = arith.constant 0 : index
    %c0_2 = arith.constant 0 : index
    %0 = vector.load %arg4[%c0, %c0_0, %c0_1, %c0_2] : memref<1x3x16x16xf32, #tpu.memory_space<vmem>>, vector<1x1x16x16xf32>
    %1 = vector.shape_cast %0 : vector<1x1x16x16xf32> to vector<16x16xf32>
    %c0_3 = arith.constant 0 : index
    %2 = memref.load %arg2[%c0_3] : memref<3xf32, #tpu.memory_space<smem>>
    %3 = vector.broadcast %2 : f32 to vector<16x16xf32>
    %4 = arith.mulf %1, %3 : vector<16x16xf32>
    %c0_4 = arith.constant 0 : index
    %5 = memref.load %arg3[%c0_4] : memref<3xf32, #tpu.memory_space<smem>>
    %6 = vector.broadcast %5 : f32 to vector<16x16xf32>
    %7 = arith.addf %4, %6 : vector<16x16xf32>
    %c0_5 = arith.constant 0 : index
    %c0_6 = arith.constant 0 : index
    %c0_7 = arith.constant 0 : index
    %c0_8 = arith.constant 0 : index
    %8 = vector.load %arg5[%c0_5, %c0_6, %c0_7, %c0_8] : memref<1x3x16x16xf32, #tpu.memory_space<vmem>>, vector<1x1x16x16xf32>
    %9 = vector.shape_cast %8 : vector<1x1x16x16xf32> to vector<16x16xf32>
    %10 = vector.shape_cast %7 : vector<16x16xf32> to vector<1x1x16x16xf32>
    tpu.vector_store %arg5[%c0_5, %c0_6, %c0_7, %c0_8], %10 {strides = array<i32>} : memref<1x3x16x16xf32, #tpu.memory_space<vmem>>, vector<1x1x16x16xf32>,
    %c0_9 = arith.constant 0 : index
    %c1 = arith.constant 1 : index
    %c0_10 = arith.constant 0 : index
    %c0_11 = arith.constant 0 : index
    %11 = vector.load %arg4[%c0_9, %c1, %c0_10, %c0_11] : memref<1x3x16x16xf32, #tpu.memory_space<vmem>>, vector<1x1x16x16xf32>
    %12 = vector.shape_cast %11 : vector<1x1x16x16xf32> to vector<16x16xf32>
    %c1_12 = arith.constant 1 : index
    %13 = memref.load %arg2[%c1_12] : memref<3xf32, #tpu.memory_space<smem>>
    %14 = vector.broadcast %13 : f32 to vector<16x16xf32>
    %15 = arith.mulf %12, %14 : vector<16x16xf32>
    %c1_13 = arith.constant 1 : index
    %16 = memref.load %arg3[%c1_13] : memref<3xf32, #tpu.memory_space<smem>>
    %17 = vector.broadcast %16 : f32 to vector<16x16xf32>
    %18 = arith.addf %15, %17 : vector<16x16xf32>
    %c0_14 = arith.constant 0 : index
    %c1_15 = arith.constant 1 : index
    %c0_16 = arith.constant 0 : index
    %c0_17 = arith.constant 0 : index
    %19 = vector.load %arg5[%c0_14, %c1_15, %c0_16, %c0_17] : memref<1x3x16x16xf32, #tpu.memory_space<vmem>>, vector<1x1x16x16xf32>
    %20 = vector.shape_cast %19 : vector<1x1x16x16xf32> to vector<16x16xf32>
    %21 = vector.shape_cast %18 : vector<16x16xf32> to vector<1x1x16x16xf32>
    tpu.vector_store %arg5[%c0_14, %c1_15, %c0_16, %c0_17], %21 {strides = array<i32>} : memref<1x3x16x16xf32, #tpu.memory_space<vmem>>, vector<1x1x16x16xf32>,
    %c0_18 = arith.constant 0 : index
    %c2 = arith.constant 2 : index
    %c0_19 = arith.constant 0 : index
    %c0_20 = arith.constant 0 : index
    %22 = vector.load %arg4[%c0_18, %c2, %c0_19, %c0_20] : memref<1x3x16x16xf32, #tpu.memory_space<vmem>>, vector<1x1x16x16xf32>
    %23 = vector.shape_cast %22 : vector<1x1x16x16xf32> to vector<16x16xf32>
    %c2_21 = arith.constant 2 : index
    %24 = memref.load %arg2[%c2_21] : memref<3xf32, #tpu.memory_space<smem>>
    %25 = vector.broadcast %24 : f32 to vector<16x16xf32>
    %26 = arith.mulf %23, %25 : vector<16x16xf32>
    %c2_22 = arith.constant 2 : index
    %27 = memref.load %arg3[%c2_22] : memref<3xf32, #tpu.memory_space<smem>>
    %28 = vector.broadcast %27 : f32 to vector<16x16xf32>
    %29 = arith.addf %26, %28 : vector<16x16xf32>
    %c0_23 = arith.constant 0 : index
    %c2_24 = arith.constant 2 : index
    %c0_25 = arith.constant 0 : index
    %c0_26 = arith.constant 0 : index
    %30 = vector.load %arg5[%c0_23, %c2_24, %c0_25, %c0_26] : memref<1x3x16x16xf32, #tpu.memory_space<vmem>>, vector<1x1x16x16xf32>
    %31 = vector.shape_cast %30 : vector<1x1x16x16xf32> to vector<16x16xf32>
    %32 = vector.shape_cast %29 : vector<16x16xf32> to vector<1x1x16x16xf32>
    tpu.vector_store %arg5[%c0_23, %c2_24, %c0_25, %c0_26], %32 {strides = array<i32>} : memref<1x3x16x16xf32, #tpu.memory_space<vmem>>, vector<1x1x16x16xf32>,
    return
  }
  func.func @transform_0(%arg0: i32, %arg1: i32) -> i32 {
    %c0_i32 = arith.constant 0 : i32
    %c0_i32_0 = arith.constant 0 : i32
    return %c0_i32 : i32
  }
  func.func @transform_1(%arg0: i32, %arg1: i32) -> i32 {
    %c0_i32 = arith.constant 0 : i32
    %c0_i32_0 = arith.constant 0 : i32
    return %c0_i32 : i32
  }
  func.func @transform_2(%arg0: i32, %arg1: i32) -> (i32, i32, i32, i32) {
    %c0_i32 = arith.constant 0 : i32
    %c0_i32_0 = arith.constant 0 : i32
    %c0_i32_1 = arith.constant 0 : i32
    return %arg0, %c0_i32, %arg1, %c0_i32_0 : i32, i32, i32, i32
  }
  func.func @transform_3(%arg0: i32, %arg1: i32) -> (i32, i32, i32, i32) {
    %c0_i32 = arith.constant 0 : i32
    %c0_i32_0 = arith.constant 0 : i32
    %c0_i32_1 = arith.constant 0 : i32
    return %arg0, %c0_i32, %arg1, %c0_i32_0 : i32, i32, i32, i32
  }
}

</mosaic_0001>

<llo_original>
// kernel: tpu_custom_call.1
$region0: #{tpu_custom_call.1}
  #allocation0 [shape = 'u32[]', space=smem, size = 0x4, offset = 0x4, fixed_abs, tag = 'smem constant byte address 0x4 - core index']
  #allocation1 [shape = 'u32[144,128]{1,0:T(1,128)}', space=vmem, size = 0x12000, scoped, tag = 'internal scratch']
  %s0 = inlined_call_operand.hbm [shape: f32[3], index: 0, kind: input, shape index: {}]
  %s1 = inlined_call_operand.vmem [shape: f32[3], index: 1, kind: input, shape index: {}]
  %s2 = inlined_call_operand.hbm [shape: f32[2,3,16,16], index: 2, kind: input, shape index: {}]
  %s3 = inlined_call_operand.hbm [shape: f32[2,3,16,16], index: 3, kind: output, shape index: {}]
  %s4 = sld [smem:[#allocation0]]
  $region57: #{tpu_custom_call.1} parent=0
    _
  %s6 = ssub.s32 1, %s4
  %s7 = scalar_select 0, %s6, %s4
  $region1: #{tpu_custom_call.1} parent=0
    #allocation2 [shape = 'u8[512]{0}', space=smem, size = 0x200, scoped, tag = 'input window, operand 0, single buffered']
    #allocation3 [shape = 's32[2]{0}', space=sflag, size = 0x8, scoped, tag = 'scoped memory for tpu_custom_call.1']
    #allocation4 [shape = 's32[2]{0}', space=sflag, size = 0x8, scoped, tag = 'scoped memory for tpu_custom_call.1']
    #allocation5 [shape = 's32[2]{0}', space=sflag, size = 0x8, scoped, tag = 'scoped memory for tpu_custom_call.1']
    #allocation6 [shape = 's32[2]{0}', space=sflag, size = 0x8, scoped, tag = 'scoped memory for tpu_custom_call.1']
    #allocation7 [shape = 'u8[512]{0}', space=smem, size = 0x200, scoped, tag = 'input window, operand 1, single buffered']
    #allocation8 [shape = 'u8[49152]{0}', space=vmem, size = 0xc000, scoped, tag = 'input window, operand 2']
    #allocation9 [shape = 'u8[49152]{0}', space=vmem, size = 0xc000, scoped, tag = 'output window, operand 0']
    %8 = vsyncpa [#allocation5], 0
    %9 = vsyncpa [#allocation6], 0
    %10 = vsyncpa [#allocation3], 0
    %s11 = scalar_lea.sflag [#allocation3], 1
    %12 = vsyncpa %s11, 0
    %13 = vsyncpa [#allocation4], 0
    %s14 = scalar_lea.sflag [#allocation4], 1
    %15 = vsyncpa %s14, 0
    loop: start=0, step=1, limit=4
    $region2: #{tpu_custom_call.1} parent=1 // loop_pre_header
      _
    $region3: #{tpu_custom_call.1} parent=1 // loop_header
      %s17 = sphi 0, %s21
      %p18 = scmp.ge.s32.totalorder %s17, 4
      %s24 = sphi 0, %s36
      %s25 = sphi 0, %s32
      %s26 = sphi 0, %s24
      %s27 = sphi 0, %s25
      %s28 = sphi 0, %s26
      %s29 = sphi 0, %s27
      %s37 = sphi 0, %s37
      %s39 = sphi 0, %s37
      %s40 = sphi 0, %s39
      %s54 = sphi 0, %s40
      %s58 = sphi 0, %s58
      %s60 = sphi 0, %s58
      %s61 = sphi 0, %s60
      %s75 = sphi 0, %s61
      %s83 = sphi 0, %s85
      %s86 = sphi 0, %s83
      %s87 = sphi 0, %s86
      %s103 = sphi 0, %s87
      %s111 = sphi 0, %s113
      %s114 = sphi 0, %s111
      %s115 = sphi 0, %s114
      %s131 = sphi 0, %s115
    $region4: #{tpu_custom_call.1} parent=1 // loop_header_branch
      %20 = sbr.rel (%p18) target = $region8
    $region5: #{tpu_custom_call.1} parent=1 // loop_body
      %s22 = ssub.s32 %s17, 1
      %s23 = ssub.s32 %s17, 2
      %s30 = sadd.s32 1, %s25
      %p31 = scmp.ge.s32.totalorder %s30, 1
      %s32 = scalar_select %p31, 0, %s30
      %s33 = sadd.s32 1, %s24
      %s34 = scalar_select %p31, %s33, %s24
      %p35 = scmp.ge.s32.totalorder %s34, 2
      %s36 = scalar_select %p35, 0, %s34
      %s38 = sadd.s32 %s37, 1
      %p41 = scmp.eq.s32.totalorder %s17, 1
      %p42 = scmp.ne.s32.totalorder %s37, %s39
      %p43 = scmp.eq.s32.totalorder %s17, 0
      %p44 = por %p42, %p43
      %p45 = scmp.ne.s32.totalorder %s37, %s39
      %p46 = scmp.eq.s32.totalorder %s22, 1
      %p47 = por %p45, %p46
      %p48 = scmp.ne.s32.totalorder %s39, %s40
      %p49 = scmp.eq.s32.totalorder %s22, 0
      %p50 = por %p48, %p49
      %p51 = scmp.ne.s32.totalorder %s39, %s40
      %p52 = scmp.eq.s32.totalorder %s23, 1
      %p53 = por %p51, %p52
      %p55 = scmp.ne.s32.totalorder %s40, %s54
      %p56 = scmp.eq.s32.totalorder %s23, 0
      %p57 = por %p55, %p56
      %s59 = sadd.s32 %s58, 1
      %p62 = scmp.eq.s32.totalorder %s17, 1
      %p63 = scmp.ne.s32.totalorder %s58, %s60
      %p64 = scmp.eq.s32.totalorder %s17, 0
      %p65 = por %p63, %p64
      %p66 = scmp.ne.s32.totalorder %s58, %s60
      %p67 = scmp.eq.s32.totalorder %s22, 1
      %p68 = por %p66, %p67
      %p69 = scmp.ne.s32.totalorder %s60, %s61
      %p70 = scmp.eq.s32.totalorder %s22, 0
      %p71 = por %p69, %p70
      %p72 = scmp.ne.s32.totalorder %s60, %s61
      %p73 = scmp.eq.s32.totalorder %s23, 1
      %p74 = por %p72, %p73
      %p76 = scmp.ne.s32.totalorder %s61, %s75
      %p77 = scmp.eq.s32.totalorder %s23, 0
      %p78 = por %p76, %p77
      %s79 = ssub.s32 %s24, %s36
      %s80 = ssub.s32 %s25, %s32
      %s81 = sor.u32 %s79, %s80
      %p82 = scmp.eq.s32.totalorder %s81, 0
      %s84 = sadd.s32 %s83, 1
      %s85 = scalar_select %p82, %s83, %s84
      %p88 = pneg %p82
      %p89 = scmp.eq.s32.totalorder %s17, 1
      %p90 = por %p88, %p89
      %p91 = scmp.ne.s32.totalorder %s83, %s86
      %p92 = scmp.eq.s32.totalorder %s17, 0
      %p93 = por %p91, %p92
      %p94 = scmp.ne.s32.totalorder %s83, %s86
      %p95 = scmp.eq.s32.totalorder %s22, 1
      %p96 = por %p94, %p95
      %p97 = scmp.ne.s32.totalorder %s86, %s87
      %p98 = scmp.eq.s32.totalorder %s22, 0
      %p99 = por %p97, %p98
      %p100 = scmp.ne.s32.totalorder %s86, %s87
      %p101 = scmp.eq.s32.totalorder %s23, 1
      %p102 = por %p100, %p101
      %p104 = scmp.ne.s32.totalorder %s87, %s103
      %p105 = scmp.eq.s32.totalorder %s23, 0
      %p106 = por %p104, %p105
      %s107 = ssub.s32 %s24, %s36
      %s108 = ssub.s32 %s25, %s32
      %s109 = sor.u32 %s107, %s108
      %p110 = scmp.eq.s32.totalorder %s109, 0
      %s112 = sadd.s32 %s111, 1
      %s113 = scalar_select %p110, %s111, %s112
      %p116 = pneg %p110
      %p117 = scmp.eq.s32.totalorder %s17, 1
      %p118 = por %p116, %p117
      %p119 = scmp.ne.s32.totalorder %s111, %s114
      %p120 = scmp.eq.s32.totalorder %s17, 0
      %p121 = por %p119, %p120
      %p122 = scmp.ne.s32.totalorder %s111, %s114
      %p123 = scmp.eq.s32.totalorder %s22, 1
      %p124 = por %p122, %p123
      %p125 = scmp.ne.s32.totalorder %s114, %s115
      %p126 = scmp.eq.s32.totalorder %s22, 0
      %p127 = por %p125, %p126
      %p128 = scmp.ne.s32.totalorder %s114, %s115
      %p129 = scmp.eq.s32.totalorder %s23, 1
      %p130 = por %p128, %p129
      %p132 = scmp.ne.s32.totalorder %s115, %s131
      %p133 = scmp.eq.s32.totalorder %s23, 0
      %p134 = por %p132, %p133
      %p135 = scmp.le.s32.totalorder 1, %s17
      %p136 = scmp.lt.s32.totalorder %s17, 3
      %p137 = pnand %p135, %p136
      %p138 = pneg %p137
      // Predicated region
      $region9: #{tpu_custom_call.1} parent=5 // pred_check
        _
      $region10: #{tpu_custom_call.1} parent=5 // pred_check_branch
        %140 = sbr.rel (%p137) target = $region12
      $region11: #{tpu_custom_call.1} parent=5 // pred_region
        %s141 = ssub.s32 %s17, 1
        // Predicated region
        $region13: #{tpu_custom_call.1} parent=11 // pred_check
          %p142 = pneg %p50
        $region14: #{tpu_custom_call.1} parent=11 // pred_check_branch
          %144 = sbr.rel (%p142) target = $region16
        $region15: #{tpu_custom_call.1} parent=11 // pred_region
          %s146 = ssub.s32 16, 16
          %147 = vsyncadd [#allocation5], %s146
          %150 = dma.hbm_to_smem %s0, 16, [#allocation2], [#allocation5]
        $region16: #{tpu_custom_call.1} parent=11 // pred_fallthru
          _
        // Predicated region
        $region17: #{tpu_custom_call.1} parent=11 // pred_check
          %p151 = pneg %p71
        $region18: #{tpu_custom_call.1} parent=11 // pred_check_branch
          %153 = sbr.rel (%p151) target = $region20
        $region19: #{tpu_custom_call.1} parent=11 // pred_region
          %s155 = ssub.s32 16, 16
          %156 = vsyncadd [#allocation6], %s155
          %s158 = sshll.u32 %s1, 4
          %s159 = int_to_ptr.vmem [resolvable:$true] %s158
          %161 = dma.vmem_to_smem %s159, 16, [#allocation7], [#allocation6]
        $region20: #{tpu_custom_call.1} parent=11 // pred_fallthru
          _
      $region12: #{tpu_custom_call.1} parent=5 // pred_fallthru
        _
      %p162 = scmp.lt.s32.totalorder %s17, 2
      // Predicated region
      $region21: #{tpu_custom_call.1} parent=5 // pred_check
        %p163 = pneg %p162
      $region22: #{tpu_custom_call.1} parent=5 // pred_check_branch
        %165 = sbr.rel (%p163) target = $region24
      $region23: #{tpu_custom_call.1} parent=5 // pred_region
        // Predicated region
        $region25: #{tpu_custom_call.1} parent=23 // pred_check
          %p166 = pneg %p93
        $region26: #{tpu_custom_call.1} parent=23 // pred_check_branch
          %168 = sbr.rel (%p166) target = $region28
        $region27: #{tpu_custom_call.1} parent=23 // pred_region
          %s169 = sand.u32 %s83, 1
          %s170 = scalar_lea.sflag [#allocation3], %s169
          %s171 = sand.u32 %s83, 1
          %s172 = smul.addr %s171, 48
          %s173 = scalar_lea.vmem [#allocation8], %s172
          %s174 = smul.u32 2, %s25
          %s176 = ssub.s32 768, 768
          %177 = vsyncadd %s170, %s176
          %s178 = smul.addr %s24, 6
          %s179 = sadd.s32 %s174, %s178
          %s180 = smul.addr %s179, 128
          %s181 = scalar_lea.hbm %s2, %s180
          %s182 = sshll.u32 %s173, 4
          %s183 = int_to_ptr.vmem [resolvable:$true] %s182
          %188 = dma.hbm_to_vmem [thread:$0]  %s181, 768, %s183, %s170, 128, 128, 8
        $region28: #{tpu_custom_call.1} parent=23 // pred_fallthru
          _
      $region24: #{tpu_custom_call.1} parent=5 // pred_fallthru
        _
      %p189 = scmp.le.s32.totalorder 1, %s17
      %p190 = scmp.lt.s32.totalorder %s17, 3
      %p191 = pnand %p189, %p190
      %p192 = pneg %p191
      // Predicated region
      $region29: #{tpu_custom_call.1} parent=5 // pred_check
        _
      $region30: #{tpu_custom_call.1} parent=5 // pred_check_branch
        %194 = sbr.rel (%p191) target = $region32
      $region31: #{tpu_custom_call.1} parent=5 // pred_region
        %s195 = ssub.s32 %s17, 1
        // Predicated region
        $region33: #{tpu_custom_call.1} parent=31 // pred_check
          %p196 = pneg %p50
        $region34: #{tpu_custom_call.1} parent=31 // pred_check_branch
          %198 = sbr.rel (%p196) target = $region36
        $region35: #{tpu_custom_call.1} parent=31 // pred_region
          %199 = dma.done [#allocation5], 16
        $region36: #{tpu_custom_call.1} parent=31 // pred_fallthru
          _
        // Predicated region
        $region37: #{tpu_custom_call.1} parent=31 // pred_check
          %p200 = pneg %p71
        $region38: #{tpu_custom_call.1} parent=31 // pred_check_branch
          %202 = sbr.rel (%p200) target = $region40
        $region39: #{tpu_custom_call.1} parent=31 // pred_region
          %203 = dma.done [#allocation6], 16
        $region40: #{tpu_custom_call.1} parent=31 // pred_fallthru
          _
        %s204 = sand.u32 %s86, 1
        %s205 = scalar_lea.sflag [#allocation3], %s204
        %s206 = sand.u32 %s86, 1
        %s207 = smul.addr %s206, 48
        %s208 = scalar_lea.vmem [#allocation8], %s207
        // Predicated region
        $region41: #{tpu_custom_call.1} parent=31 // pred_check
          %p209 = pneg %p99
        $region42: #{tpu_custom_call.1} parent=31 // pred_check_branch
          %211 = sbr.rel (%p209) target = $region44
        $region43: #{tpu_custom_call.1} parent=31 // pred_region
          %212 = dma.done %s205, 768
        $region44: #{tpu_custom_call.1} parent=31 // pred_fallthru
          _
        %213 = sfence
        %p214 = pneg %p50
        %p215 = pneg %p47
        %p216 = pneg %p71
        %p217 = pneg %p68
        %s218 = sand.u32 %s86, 1
        %s219 = scalar_lea.sflag [#allocation3], %s218
        %s220 = sand.u32 %s86, 1
        %s221 = smul.addr %s220, 48
        %s222 = scalar_lea.vmem [#allocation8], %s221
        %p223 = pneg %p99
        %p224 = pneg %p96
        %p225 = pneg %p127
        %p226 = pneg %p124
        %s227 = sand.u32 %s114, 1
        %s228 = scalar_lea.sflag [#allocation4], %s227
        %s229 = sand.u32 %s114, 1
        %s230 = smul.addr %s229, 48
        %s231 = scalar_lea.vmem [#allocation9], %s230
        %s232 = smul.u32 2, %s27
        %s233 = smul.u32 2, %s27
        %v234 = vld [vmem:[%s208] sm:$0xff]
        %v235 = vld [vmem:[%s208 + $0x8] sm:$0xff]
        %s236 = sld [smem:[#allocation2]]
        %v237 = vstv %s236
        %v238 = vmul.f32 %v234, %v237
        %v239 = vmul.f32 %v235, %v237
        %s240 = sld [smem:[#allocation7]]
        %v241 = vstv %s240
        %v242 = vadd.f32 %v238, %v241
        %v243 = vadd.f32 %v239, %v241
        %vm244 = vcmask 130048
        %245 = vst.msk [vmem:[%s231] sm:$0xff] %vm244, %v242
        %246 = vst.msk [vmem:[%s231 + $0x8] sm:$0xff] %vm244, %v243
        %s247 = scalar_lea.vmem %s208, 16 [#allocation8]
        %v248 = vld [vmem:[%s247] sm:$0xff]
        %v249 = vld [vmem:[%s247 + $0x8] sm:$0xff]
        %s250 = sld [smem:[#allocation2 + $0x1]]
        %v251 = vstv %s250
        %v252 = vmul.f32 %v248, %v251
        %v253 = vmul.f32 %v249, %v251
        %s254 = sld [smem:[#allocation7 + $0x1]]
        %v255 = vstv %s254
        %v256 = vadd.f32 %v252, %v255
        %v257 = vadd.f32 %v253, %v255
        %s258 = scalar_lea.vmem %s231, 16 [#allocation9]
        %259 = vst.msk [vmem:[%s258] sm:$0xff] %vm244, %v256
        %260 = vst.msk [vmem:[%s258 + $0x8] sm:$0xff] %vm244, %v257
        %s261 = scalar_lea.vmem %s208, 32 [#allocation8]
        %v262 = vld [vmem:[%s261] sm:$0xff]
        %v263 = vld [vmem:[%s261 + $0x8] sm:$0xff]
        %s264 = sld [smem:[#allocation2 + $0x2]]
        %v265 = vstv %s264
        %v266 = vmul.f32 %v262, %v265
        %v267 = vmul.f32 %v263, %v265
        %s268 = sld [smem:[#allocation7 + $0x2]]
        %v269 = vstv %s268
        %v270 = vadd.f32 %v266, %v269
        %v271 = vadd.f32 %v267, %v269
        %s272 = scalar_lea.vmem %s231, 32 [#allocation9]
        %273 = vst.msk [vmem:[%s272] sm:$0xff] %vm244, %v270
        %274 = vst.msk [vmem:[%s272 + $0x8] sm:$0xff] %vm244, %v271
        %s275 = sand.u32 %s114, 1
        %s276 = scalar_lea.sflag [#allocation4], %s275
        %s277 = sand.u32 %s114, 1
        %s278 = smul.addr %s277, 48
        %s279 = scalar_lea.vmem [#allocation9], %s278
        // Predicated region
        $region45: #{tpu_custom_call.1} parent=31 // pred_check
          %p280 = pneg %p124
        $region46: #{tpu_custom_call.1} parent=31 // pred_check_branch
          %282 = sbr.rel (%p280) target = $region48
        $region47: #{tpu_custom_call.1} parent=31 // pred_region
          %s283 = smul.u32 2, %s27
          %s285 = ssub.s32 768, 768
          %286 = vsyncadd %s276, %s285
          %s287 = smul.addr %s26, 6
          %s288 = sadd.s32 %s283, %s287
          %s289 = smul.addr %s288, 128
          %s290 = scalar_lea.hbm %s3, %s289
          %s291 = sshll.u32 %s279, 4
          %s292 = int_to_ptr.vmem [resolvable:$true] %s291
          %297 = dma.vmem_to_hbm [thread:$0]  %s292, 768, %s290, %s276, 128, 128, 8
        $region48: #{tpu_custom_call.1} parent=31 // pred_fallthru
          _
      $region32: #{tpu_custom_call.1} parent=5 // pred_fallthru
        _
      %p298 = scmp.le.s32.totalorder 2, %s17
      // Predicated region
      $region49: #{tpu_custom_call.1} parent=5 // pred_check
        %p299 = pneg %p298
      $region50: #{tpu_custom_call.1} parent=5 // pred_check_branch
        %301 = sbr.rel (%p299) target = $region52
      $region51: #{tpu_custom_call.1} parent=5 // pred_region
        %s302 = ssub.s32 %s17, 2
        // Predicated region
        $region53: #{tpu_custom_call.1} parent=51 // pred_check
          %p303 = pneg %p130
        $region54: #{tpu_custom_call.1} parent=51 // pred_check_branch
          %305 = sbr.rel (%p303) target = $region56
        $region55: #{tpu_custom_call.1} parent=51 // pred_region
          %s306 = sand.u32 %s115, 1
          %s307 = scalar_lea.sflag [#allocation4], %s306
          %s308 = sand.u32 %s115, 1
          %s309 = smul.addr %s308, 48
          %s310 = scalar_lea.vmem [#allocation9], %s309
          %311 = dma.done %s307, 768
        $region56: #{tpu_custom_call.1} parent=51 // pred_fallthru
          _
      $region52: #{tpu_custom_call.1} parent=5 // pred_fallthru
        _
    $region6: #{tpu_custom_call.1} parent=1 // loop_footer
      %s21 = sadd.s32 1, %s17
    $region7: #{tpu_custom_call.1} parent=1 // loop_footer_branch
      %16 = sbr.rel target = $region3
    $region8: #{tpu_custom_call.1} parent=1 // loop_exit
      _
    %312 = vsyncpa [#allocation3], 1
    %s313 = scalar_lea.sflag [#allocation3], 1
    %314 = vsyncpa %s313, 1
    %315 = vsyncpa [#allocation4], 1
    %s316 = scalar_lea.sflag [#allocation4], 1
    %317 = vsyncpa %s316, 1
    %318 = vsyncpa [#allocation5], 1
    %s319 = scalar_lea.sflag [#allocation5], 1
    %320 = vsyncpa %s319, 1
    %321 = vsyncpa [#allocation6], 1
    %s322 = scalar_lea.sflag [#allocation6], 1
    %323 = vsyncpa %s322, 1

</llo_original>
